<compile_context>
chip_gen: v5e
topology: v5e:2x2
jax: 0.10.0
libtpu: 0.0.40
codegen_flags: <defaults>
</compile_context>

<pallas_src>
import functools

import jax
import jax.numpy as jnp
import numpy as np
from jax.experimental import pallas as pl
from jax.experimental.pallas import tpu as pltpu


def _round_up(n, m):
    return ((n + m - 1) // m) * m


def mlp_kernel(xt_ref, freqs_ref, w1s_ref, w1c_ref, b1_ref,
               w2_ref, b2_ref, w3_ref, b3_ref, w4_ref, b4_ref, out_ref):
    """One batch tile of the DDPM MLP, entirely in VMEM.

    xt_ref:   (TB, 2) f32  -- column 0 = x, column 1 = t
    freqs_ref:(1, 2*half)  -- sinusoidal freqs tiled twice: [f | f]
    w1s/w1c:  (2*half, H)  -- W1 rows regrouped for the sin / cos halves
    """
    tb = xt_ref.shape[0]
    two_half = freqs_ref.shape[-1]
    half = two_half // 2

    xt = xt_ref[...]                                  # (TB, 2) f32
    x_col = xt[:, 0:1]                                # (TB, 1)
    t_col = xt[:, 1:2]                                # (TB, 1)
    lane = jax.lax.broadcasted_iota(jnp.int32, (tb, two_half), 1)
    # e = [x*f | t*f]  built with a lane select (VPU only, no XLU concat)
    e = jnp.where(lane < half, x_col, t_col) * freqs_ref[...]   # (TB, 2*half) f32

    def mm(a, w_ref):
        return jnp.dot(a.astype(w_ref.dtype), w_ref[...],
                       preferred_element_type=jnp.float32)

    # Layer 1:  emb @ W1 == sin(e) @ W1_sin + cos(e) @ W1_cos
    h = mm(jnp.sin(e), w1s_ref) + mm(jnp.cos(e), w1c_ref) + b1_ref[...]
    h = jnp.maximum(h, 0.0)
    h = jnp.maximum(mm(h, w2_ref) + b2_ref[...], 0.0)
    h = jnp.maximum(mm(h, w3_ref) + b3_ref[...], 0.0)
    out_ref[...] = mm(h, w4_ref) + b4_ref[...]        # lane-dense (TB, nout_pad) store


@functools.partial(jax.jit, static_argnames=("emb_size", "block_b"))
def mlp_forward(x, t, params, emb_size, block_b=256):
    """x, t: (B,) float arrays. params: flat tuple (w1,b1,w2,b2,w3,b3,w4,b4).

    Hard-wired for hidden_layers=3 (4 Linear layers), the module's default.
    """
    w1, b1, w2, b2, w3, b3, w4, b4 = params
    B = x.shape[0]
    half = emb_size // 2          # NOTE: emb_size must be >= 4 (half-1 denominator)
    nout = w4.shape[-1]

    # Sinusoidal frequency table, tiled twice for the [x*f | t*f] angle block.
    freqs = jnp.exp(
        -(jnp.log(jnp.float32(10000.0)) / (half - 1))
        * jnp.arange(half, dtype=jnp.float32))
    freqs2 = jnp.tile(freqs, 2).reshape(1, 2 * half)

    # Batch tiling: tile must be a multiple of 8 sublanes; pad B to whole tiles.
    tb = min(block_b, _round_up(B, 8))
    b_pad = _round_up(B, tb)
    xt = jnp.stack([x.astype(jnp.float32), t.astype(jnp.float32)], axis=-1)  # (B, 2)
    xt = jnp.pad(xt, ((0, b_pad - B), (0, 0)))

    # bf16 matmul operands (accumulation stays f32 inside the kernel).
    bf = lambda w: w.astype(jnp.bfloat16)
    # W1 rows follow the concat order [sin(x*f), cos(x*f), sin(t*f), cos(t*f)];
    # regroup into the sin / cos halves matching e = [x*f | t*f].
    w1_sin = jnp.concatenate([w1[0:half], w1[2 * half:3 * half]], axis=0)
    w1_cos = jnp.concatenate([w1[half:2 * half], w1[3 * half:4 * half]], axis=0)

    # Lane-dense output: pad nout up to a multiple of 128 so stores are unmasked.
    nout_pad = _round_up(nout, 128)
    w4p = bf(jnp.pad(w4, ((0, 0), (0, nout_pad - nout))))
    b4p = jnp.pad(b4, ((0, 0), (0, nout_pad - nout)))

    inputs = (xt, freqs2, bf(w1_sin), bf(w1_cos), b1,
              bf(w2), b2, bf(w3), b3, w4p, b4p)

    tiled = lambda shape: pl.BlockSpec(shape, lambda i: (i, 0))      # batch-tiled
    resident = lambda a: pl.BlockSpec(a.shape, lambda i: (0, 0))     # VMEM-resident
    in_specs = [tiled((tb, 2))] + [resident(a) for a in inputs[1:]]

    out = pl.pallas_call(
        mlp_kernel,
        out_shape=jax.ShapeDtypeStruct((b_pad, nout_pad), jnp.float32),
        grid=(b_pad // tb,),
        in_specs=in_specs,
        out_specs=tiled((tb, nout_pad)),
        compiler_params=pltpu.CompilerParams(
            dimension_semantics=("parallel",)),
    )(*inputs)
    return out[:B, :nout]


def init_params(key, input_size, hidden_size, hidden_layers, nout):
    """Deterministic nn.Linear-style init: U(-1/sqrt(fan_in), 1/sqrt(fan_in))."""
    hs = [input_size] + [hidden_size] * hidden_layers + [nout]
    params = []
    for h0, h1 in zip(hs, hs[1:]):
        key, kw, kb = jax.random.split(key, 3)
        bound = 1.0 / np.sqrt(h0)
        w = jax.random.uniform(kw, (h0, h1), jnp.float32, -bound, bound)
        b = jax.random.uniform(kb, (1, h1), jnp.float32, -bound, bound)
        params += [w, b]
    return tuple(params)


def reference_forward(x, t, params, emb_size):
    """Pure numpy (f32) reference matching the PyTorch module."""
    half = emb_size // 2
    freqs = np.exp(-(np.log(10000.0) / (half - 1)) * np.arange(half)).astype(np.float32)

    def sinus(v):
        e = np.asarray(v, np.float32)[:, None] * freqs[None, :]
        return np.concatenate([np.sin(e), np.cos(e)], axis=-1)

    h = np.concatenate([sinus(x), sinus(t)], axis=-1).astype(np.float32)
    ps = [np.asarray(p) for p in params]
    n_layers = len(ps) // 2
    for i in range(n_layers):
        h = h @ ps[2 * i] + ps[2 * i + 1]
        if i < n_layers - 1:
            h = np.maximum(h, 0.0)
    return h


if __name__ == "__main__":
    # Small, module-consistent configuration.
    nin, nout = 2, 2
    num_timesteps = 50
    emb_size = 32          # sinusoidal embedding size (t_size = i_size = emb_size)
    hidden_size = 32
    hidden_layers = 3
    B = 20                 # not a tile multiple -> exercises padding + 3-step grid

    key = jax.random.PRNGKey(0)
    kx, kt, kp = jax.random.split(key, 3)

    x = jax.random.normal(kx, (B,), dtype=jnp.float32)
    t = jax.random.randint(kt, (B,), 0, num_timesteps).astype(jnp.float32)

    input_size = emb_size + emb_size  # sinusoidal time + sinusoidal input
    params = init_params(kp, input_size, hidden_size, hidden_layers, nout)

    out = mlp_forward(x, t, params, emb_size, block_b=8)
    out = jax.block_until_ready(out)

    ref = reference_forward(np.asarray(x), np.asarray(t), params, emb_size)
    # bf16 MXU operands with f32 accumulation -> loosened tolerance vs f32 reference.
    np.testing.assert_allclose(np.asarray(out), ref, rtol=5e-2, atol=5e-2)

    print("KERNEL_OK")
</pallas_src>

<mosaic_0001>
module attributes {stable_mosaic.version = 11 : i64} {
  func.func @mlp_kernel(%arg0: i32, %arg1: memref<8x2xf32, #tpu.memory_space<vmem>>, %arg2: memref<1x32xf32, #tpu.memory_space<vmem>>, %arg3: memref<32x32xbf16, #tpu.memory_space<vmem>>, %arg4: memref<32x32xbf16, #tpu.memory_space<vmem>>, %arg5: memref<1x32xf32, #tpu.memory_space<vmem>>, %arg6: memref<32x32xbf16, #tpu.memory_space<vmem>>, %arg7: memref<1x32xf32, #tpu.memory_space<vmem>>, %arg8: memref<32x32xbf16, #tpu.memory_space<vmem>>, %arg9: memref<1x32xf32, #tpu.memory_space<vmem>>, %arg10: memref<32x128xbf16, #tpu.memory_space<vmem>>, %arg11: memref<1x128xf32, #tpu.memory_space<vmem>>, %arg12: memref<8x128xf32, #tpu.memory_space<vmem>>) attributes {dimension_semantics = [#tpu.dimension_semantics<parallel>], iteration_bounds = array<i64: 3>, scalar_prefetch = 0 : i64, scratch_operands = 0 : i64, tpu.core_type = #tpu.core_type<tc>, window_params = [{transform_indices = @transform_0, window_bounds = array<i64: 8, 2>}, {pipeline_mode = #tpu.pipeline_mode<synchronous>, transform_indices = @transform_1, window_bounds = array<i64: 1, 32>}, {pipeline_mode = #tpu.pipeline_mode<synchronous>, transform_indices = @transform_2, window_bounds = array<i64: 32, 32>}, {pipeline_mode = #tpu.pipeline_mode<synchronous>, transform_indices = @transform_3, window_bounds = array<i64: 32, 32>}, {pipeline_mode = #tpu.pipeline_mode<synchronous>, transform_indices = @transform_4, window_bounds = array<i64: 1, 32>}, {pipeline_mode = #tpu.pipeline_mode<synchronous>, transform_indices = @transform_5, window_bounds = array<i64: 32, 32>}, {pipeline_mode = #tpu.pipeline_mode<synchronous>, transform_indices = @transform_6, window_bounds = array<i64: 1, 32>}, {pipeline_mode = #tpu.pipeline_mode<synchronous>, transform_indices = @transform_7, window_bounds = array<i64: 32, 32>}, {pipeline_mode = #tpu.pipeline_mode<synchronous>, transform_indices = @transform_8, window_bounds = array<i64: 1, 32>}, {pipeline_mode = #tpu.pipeline_mode<synchronous>, transform_indices = @transform_9, window_bounds = array<i64: 32, 128>}, {pipeline_mode = #tpu.pipeline_mode<synchronous>, transform_indices = @transform_10, window_bounds = array<i64: 1, 128>}, {transform_indices = @transform_11, window_bounds = array<i64: 8, 128>}]} {
    %c0 = arith.constant 0 : index
    %c0_0 = arith.constant 0 : index
    %0 = vector.load %arg1[%c0, %c0_0] : memref<8x2xf32, #tpu.memory_space<vmem>>, vector<8x2xf32>
    %1 = vector.extract_strided_slice %0 {offsets = [0, 0], sizes = [8, 1], strides = [1, 1]} : vector<8x2xf32> to vector<8x1xf32>
    %2 = vector.extract_strided_slice %0 {offsets = [0, 1], sizes = [8, 1], strides = [1, 1]} : vector<8x2xf32> to vector<8x1xf32>
    %3 = tpu.iota {dimensions = array<i32: 1>} : vector<8x32xi32>
    %c16_i32 = arith.constant 16 : i32
    %4 = vector.broadcast %c16_i32 : i32 to vector<8x32xi32>
    %5 = arith.cmpi slt, %3, %4 : vector<8x32xi32>
    %6 = vector.shape_cast %1 : vector<8x1xf32> to vector<8x1xf32>
    %7 = vector.broadcast %6 : vector<8x1xf32> to vector<8x32xf32>
    %8 = vector.shape_cast %2 : vector<8x1xf32> to vector<8x1xf32>
    %9 = vector.broadcast %8 : vector<8x1xf32> to vector<8x32xf32>
    %10 = arith.select %5, %7, %9 : vector<8x32xi1>, vector<8x32xf32>
    %c0_1 = arith.constant 0 : index
    %c0_2 = arith.constant 0 : index
    %11 = vector.load %arg2[%c0_1, %c0_2] : memref<1x32xf32, #tpu.memory_space<vmem>>, vector<1x32xf32>
    %12 = vector.broadcast %11 : vector<1x32xf32> to vector<8x32xf32>
    %13 = arith.mulf %10, %12 : vector<8x32xf32>
    %14 = math.sin %13 : vector<8x32xf32>
    %15 = arith.truncf %14 : vector<8x32xf32> to vector<8x32xbf16>
    %c0_3 = arith.constant 0 : index
    %c0_4 = arith.constant 0 : index
    %16 = vector.load %arg3[%c0_3, %c0_4] : memref<32x32xbf16, #tpu.memory_space<vmem>>, vector<32x32xbf16>
    %cst = arith.constant dense<0.000000e+00> : vector<8x32xf32>
    %17 = tpu.matmul %15, %16, %cst {dimension_numbers = #tpu.dot_dimension_numbers<[1], [0], [0], [1], [0, 0, 1, 1], [], []>} : vector<8x32xbf16>, vector<32x32xbf16>, vector<8x32xf32> -> vector<8x32xf32>
    %18 = math.cos %13 : vector<8x32xf32>
    %19 = arith.truncf %18 : vector<8x32xf32> to vector<8x32xbf16>
    %c0_5 = arith.constant 0 : index
    %c0_6 = arith.constant 0 : index
    %20 = vector.load %arg4[%c0_5, %c0_6] : memref<32x32xbf16, #tpu.memory_space<vmem>>, vector<32x32xbf16>
    %cst_7 = arith.constant dense<0.000000e+00> : vector<8x32xf32>
    %21 = tpu.matmul %19, %20, %cst_7 {dimension_numbers = #tpu.dot_dimension_numbers<[1], [0], [0], [1], [0, 0, 1, 1], [], []>} : vector<8x32xbf16>, vector<32x32xbf16>, vector<8x32xf32> -> vector<8x32xf32>
    %22 = arith.addf %17, %21 : vector<8x32xf32>
    %c0_8 = arith.constant 0 : index
    %c0_9 = arith.constant 0 : index
    %23 = vector.load %arg5[%c0_8, %c0_9] : memref<1x32xf32, #tpu.memory_space<vmem>>, vector<1x32xf32>
    %24 = vector.broadcast %23 : vector<1x32xf32> to vector<8x32xf32>
    %25 = arith.addf %22, %24 : vector<8x32xf32>
    %cst_10 = arith.constant 0.000000e+00 : f32
    %26 = vector.broadcast %cst_10 : f32 to vector<8x32xf32>
    %27 = arith.maximumf %25, %26 : vector<8x32xf32>
    %28 = arith.truncf %27 : vector<8x32xf32> to vector<8x32xbf16>
    %c0_11 = arith.constant 0 : index
    %c0_12 = arith.constant 0 : index
    %29 = vector.load %arg6[%c0_11, %c0_12] : memref<32x32xbf16, #tpu.memory_space<vmem>>, vector<32x32xbf16>
    %cst_13 = arith.constant dense<0.000000e+00> : vector<8x32xf32>
    %30 = tpu.matmul %28, %29, %cst_13 {dimension_numbers = #tpu.dot_dimension_numbers<[1], [0], [0], [1], [0, 0, 1, 1], [], []>} : vector<8x32xbf16>, vector<32x32xbf16>, vector<8x32xf32> -> vector<8x32xf32>
    %c0_14 = arith.constant 0 : index
    %c0_15 = arith.constant 0 : index
    %31 = vector.load %arg7[%c0_14, %c0_15] : memref<1x32xf32, #tpu.memory_space<vmem>>, vector<1x32xf32>
    %32 = vector.broadcast %31 : vector<1x32xf32> to vector<8x32xf32>
    %33 = arith.addf %30, %32 : vector<8x32xf32>
    %cst_16 = arith.constant 0.000000e+00 : f32
    %34 = vector.broadcast %cst_16 : f32 to vector<8x32xf32>
    %35 = arith.maximumf %33, %34 : vector<8x32xf32>
    %36 = arith.truncf %35 : vector<8x32xf32> to vector<8x32xbf16>
    %c0_17 = arith.constant 0 : index
    %c0_18 = arith.constant 0 : index
    %37 = vector.load %arg8[%c0_17, %c0_18] : memref<32x32xbf16, #tpu.memory_space<vmem>>, vector<32x32xbf16>
    %cst_19 = arith.constant dense<0.000000e+00> : vector<8x32xf32>
    %38 = tpu.matmul %36, %37, %cst_19 {dimension_numbers = #tpu.dot_dimension_numbers<[1], [0], [0], [1], [0, 0, 1, 1], [], []>} : vector<8x32xbf16>, vector<32x32xbf16>, vector<8x32xf32> -> vector<8x32xf32>
    %c0_20 = arith.constant 0 : index
    %c0_21 = arith.constant 0 : index
    %39 = vector.load %arg9[%c0_20, %c0_21] : memref<1x32xf32, #tpu.memory_space<vmem>>, vector<1x32xf32>
    %40 = vector.broadcast %39 : vector<1x32xf32> to vector<8x32xf32>
    %41 = arith.addf %38, %40 : vector<8x32xf32>
    %cst_22 = arith.constant 0.000000e+00 : f32
    %42 = vector.broadcast %cst_22 : f32 to vector<8x32xf32>
    %43 = arith.maximumf %41, %42 : vector<8x32xf32>
    %44 = arith.truncf %43 : vector<8x32xf32> to vector<8x32xbf16>
    %c0_23 = arith.constant 0 : index
    %c0_24 = arith.constant 0 : index
    %45 = vector.load %arg10[%c0_23, %c0_24] : memref<32x128xbf16, #tpu.memory_space<vmem>>, vector<32x128xbf16>
    %cst_25 = arith.constant dense<0.000000e+00> : vector<8x128xf32>
    %46 = tpu.matmul %44, %45, %cst_25 {dimension_numbers = #tpu.dot_dimension_numbers<[1], [0], [0], [1], [0, 0, 1, 1], [], []>} : vector<8x32xbf16>, vector<32x128xbf16>, vector<8x128xf32> -> vector<8x128xf32>
    %c0_26 = arith.constant 0 : index
    %c0_27 = arith.constant 0 : index
    %47 = vector.load %arg11[%c0_26, %c0_27] : memref<1x128xf32, #tpu.memory_space<vmem>>, vector<1x128xf32>
    %48 = vector.broadcast %47 : vector<1x128xf32> to vector<8x128xf32>
    %49 = arith.addf %46, %48 : vector<8x128xf32>
    %c0_28 = arith.constant 0 : index
    %c0_29 = arith.constant 0 : index
    %50 = vector.load %arg12[%c0_28, %c0_29] : memref<8x128xf32, #tpu.memory_space<vmem>>, vector<8x128xf32>
    tpu.vector_store %arg12[%c0_28, %c0_29], %49 {strides = array<i32>} : memref<8x128xf32, #tpu.memory_space<vmem>>, vector<8x128xf32>,
    return
  }
  func.func @transform_0(%arg0: i32) -> (i32, i32) {
    %c0_i32 = arith.constant 0 : i32
    %c0_i32_0 = arith.constant 0 : i32
    return %arg0, %c0_i32 : i32, i32
  }
  func.func @transform_1(%arg0: i32) -> (i32, i32) {
    %c0_i32 = arith.constant 0 : i32
    %c0_i32_0 = arith.constant 0 : i32
    %c0_i32_1 = arith.constant 0 : i32
    return %c0_i32, %c0_i32_0 : i32, i32
  }
  func.func @transform_2(%arg0: i32) -> (i32, i32) {
    %c0_i32 = arith.constant 0 : i32
    %c0_i32_0 = arith.constant 0 : i32
    %c0_i32_1 = arith.constant 0 : i32
    return %c0_i32, %c0_i32_0 : i32, i32
  }
  func.func @transform_3(%arg0: i32) -> (i32, i32) {
    %c0_i32 = arith.constant 0 : i32
    %c0_i32_0 = arith.constant 0 : i32
    %c0_i32_1 = arith.constant 0 : i32
    return %c0_i32, %c0_i32_0 : i32, i32
  }
  func.func @transform_4(%arg0: i32) -> (i32, i32) {
    %c0_i32 = arith.constant 0 : i32
    %c0_i32_0 = arith.constant 0 : i32
    %c0_i32_1 = arith.constant 0 : i32
    return %c0_i32, %c0_i32_0 : i32, i32
  }
  func.func @transform_5(%arg0: i32) -> (i32, i32) {
    %c0_i32 = arith.constant 0 : i32
    %c0_i32_0 = arith.constant 0 : i32
    %c0_i32_1 = arith.constant 0 : i32
    return %c0_i32, %c0_i32_0 : i32, i32
  }
  func.func @transform_6(%arg0: i32) -> (i32, i32) {
    %c0_i32 = arith.constant 0 : i32
    %c0_i32_0 = arith.constant 0 : i32
    %c0_i32_1 = arith.constant 0 : i32
    return %c0_i32, %c0_i32_0 : i32, i32
  }
  func.func @transform_7(%arg0: i32) -> (i32, i32) {
    %c0_i32 = arith.constant 0 : i32
    %c0_i32_0 = arith.constant 0 : i32
    %c0_i32_1 = arith.constant 0 : i32
    return %c0_i32, %c0_i32_0 : i32, i32
  }
  func.func @transform_8(%arg0: i32) -> (i32, i32) {
    %c0_i32 = arith.constant 0 : i32
    %c0_i32_0 = arith.constant 0 : i32
    %c0_i32_1 = arith.constant 0 : i32
    return %c0_i32, %c0_i32_0 : i32, i32
  }
  func.func @transform_9(%arg0: i32) -> (i32, i32) {
    %c0_i32 = arith.constant 0 : i32
    %c0_i32_0 = arith.constant 0 : i32
    %c0_i32_1 = arith.constant 0 : i32
    return %c0_i32, %c0_i32_0 : i32, i32
  }
  func.func @transform_10(%arg0: i32) -> (i32, i32) {
    %c0_i32 = arith.constant 0 : i32
    %c0_i32_0 = arith.constant 0 : i32
    %c0_i32_1 = arith.constant 0 : i32
    return %c0_i32, %c0_i32_0 : i32, i32
  }
  func.func @transform_11(%arg0: i32) -> (i32, i32) {
    %c0_i32 = arith.constant 0 : i32
    %c0_i32_0 = arith.constant 0 : i32
    return %arg0, %c0_i32 : i32, i32
  }
}

</mosaic_0001>

<llo_original>
// kernel: tile.8
$region0: #{tile.8}
  #allocation0 [shape = 's32[1]{0}', space=sflag, size = 0x4, scoped, tag = 'scoped memory for tile.8']
  %s0 = inlined_call_operand.vmem [shape: f32[16], index: 0, kind: input, shape index: {}]
  %s1 = inlined_call_operand.vmem [shape: f32[2,16], index: 1, kind: output, shape index: {}]
  // Predicated region
  $region2: #{tile.8} parent=0 // pred_check
    _
  $region3: #{tile.8} parent=0 // pred_check_branch
    %3 = sbr.rel (0) target = $region5
  $region4: #{tile.8} parent=0 // pred_region
    _
  $region5: #{tile.8} parent=0 // pred_fallthru
    _
  %v4 = vld [vmem:[%s0] ss:$0 sm:$0xff]
  %5 = vst [vmem:[%s1] sm:$0x3] %v4

// kernel: tile.9
$region0: #{tile.9}
  %s0 = inlined_call_operand.vmem [shape: f32[2,16], index: 0, kind: input, shape index: {}]
  %s1 = inlined_call_operand.vmem [shape: f32[1,32], index: 1, kind: output, shape index: {}]
  $region1: #{tile.9} parent=0
    #allocation0 [shape = 'u8[4096]{0}', space=vmem, size = 0x1000, scoped, tag = 'scoped mem for output reshape']
    #allocation1 [shape = 'u8[4096]{0}', space=vmem, size = 0x1000, scoped, tag = 'scoped mem for input reshape']
    %s3 = ssub.s32 4, 1
    %v4 = vld [vmem:[%s0] sm:%s3]
    %5 = vst [vmem:[#allocation1] sm:%s3] %v4
    %v6 = vld [vmem:[#allocation1] sm:$0x1]
    %vm7 = vcmask 130048
    %8 = vst.msk [vmem:[#allocation0] sm:$0x1] %vm7, %v6
    %s9 = scalar_lea.vmem [#allocation1], 1
    %v10 = vld [vmem:[%s9] sm:$0x1]
    %11 = vrot.lane.b32.xlu0 %v10, 16
    %v12 = vpop.permute.xlu0 %11
    %vm13 = vcmask 261248
    %14 = vst.msk [vmem:[#allocation0] sm:$0x1] %vm13, %v12
    %s16 = ssub.s32 2, 1
    %v17 = vld [vmem:[#allocation0] sm:%s16]
    %s19 = ssub.s32 2, 1
    %20 = vst [vmem:[%s1] sm:%s19] %v17

// kernel: mlp_forward.1
$region0: #{mlp_forward.1}
  #allocation0 [shape = 'u32[]', space=smem, size = 0x4, offset = 0x4, fixed_abs, tag = 'smem constant byte address 0x4 - core index']
  #allocation1 [shape = 'u32[72,128]{1,0:T(1,128)}', space=vmem, size = 0x9000, scoped, tag = 'internal scratch']
  %s0 = inlined_call_operand.vmem [shape: f32[24,2], index: 0, kind: input, shape index: {}]
  %s1 = inlined_call_operand.vmem [shape: f32[1,32], index: 1, kind: input, shape index: {}]
  %s2 = inlined_call_operand.vmem [shape: bf16[32,32], index: 2, kind: input, shape index: {}]
  %s3 = inlined_call_operand.vmem [shape: bf16[32,32], index: 3, kind: input, shape index: {}]
  %s4 = inlined_call_operand.vmem [shape: f32[1,32], index: 4, kind: input, shape index: {}]
  %s5 = inlined_call_operand.vmem [shape: bf16[32,32], index: 5, kind: input, shape index: {}]
  %s6 = inlined_call_operand.vmem [shape: f32[1,32], index: 6, kind: input, shape index: {}]
  %s7 = inlined_call_operand.vmem [shape: bf16[32,32], index: 7, kind: input, shape index: {}]
  %s8 = inlined_call_operand.vmem [shape: f32[1,32], index: 8, kind: input, shape index: {}]
  %s9 = inlined_call_operand.vmem [shape: bf16[32,128], index: 9, kind: input, shape index: {}]
  %s10 = inlined_call_operand.vmem [shape: f32[1,128], index: 10, kind: input, shape index: {}]
  %s11 = inlined_call_operand.vmem [shape: f32[24,128], index: 11, kind: output, shape index: {}]
  %s12 = sld [smem:[#allocation0]]
  $region77: #{mlp_forward.1} parent=0
    _
  %s14 = ssub.s32 1, %s12
  %s15 = scalar_select 0, %s14, %s12
  loop: start=0, step=1, limit=5
  $region2: #{mlp_forward.1} parent=0 // loop_pre_header
    _
  $region3: #{mlp_forward.1} parent=0 // loop_header
    %s17 = sphi 0, %s21
    %p18 = scmp.ge.s32.totalorder %s17, 5
    %s27 = sphi 0, %s29
    %s30 = sphi 0, %s27
    %s31 = sphi 0, %s30
    %s47 = sphi 0, %s31
    %s51 = sphi 0, %s51
    %s53 = sphi 0, %s51
    %s54 = sphi 0, %s53
    %s68 = sphi 0, %s54
    %s72 = sphi 0, %s72
    %s74 = sphi 0, %s72
    %s75 = sphi 0, %s74
    %s89 = sphi 0, %s75
    %s93 = sphi 0, %s93
    %s95 = sphi 0, %s93
    %s96 = sphi 0, %s95
    %s110 = sphi 0, %s96
    %s114 = sphi 0, %s114
    %s116 = sphi 0, %s114
    %s117 = sphi 0, %s116
    %s131 = sphi 0, %s117
    %s135 = sphi 0, %s135
    %s137 = sphi 0, %s135
    %s138 = sphi 0, %s137
    %s152 = sphi 0, %s138
    %s156 = sphi 0, %s156
    %s158 = sphi 0, %s156
    %s159 = sphi 0, %s158
    %s173 = sphi 0, %s159
    %s177 = sphi 0, %s177
    %s179 = sphi 0, %s177
    %s180 = sphi 0, %s179
    %s194 = sphi 0, %s180
    %s198 = sphi 0, %s198
    %s200 = sphi 0, %s198
    %s201 = sphi 0, %s200
    %s215 = sphi 0, %s201
    %s219 = sphi 0, %s219
    %s221 = sphi 0, %s219
    %s222 = sphi 0, %s221
    %s236 = sphi 0, %s222
    %s240 = sphi 0, %s240
    %s242 = sphi 0, %s240
    %s243 = sphi 0, %s242
    %s257 = sphi 0, %s243
    %s263 = sphi 0, %s265
    %s266 = sphi 0, %s263
    %s267 = sphi 0, %s266
    %s283 = sphi 0, %s267
  $region4: #{mlp_forward.1} parent=0 // loop_header_branch
    %20 = sbr.rel (%p18) target = $region8
  $region5: #{mlp_forward.1} parent=0 // loop_body
    %s22 = ssub.s32 %s17, 1
    %s23 = ssub.s32 %s17, 2
    %s24 = sadd.s32 %s17, 1
    %s25 = ssub.s32 %s17, %s24
    %p26 = scmp.eq.s32.totalorder %s25, 0
    %s28 = sadd.s32 %s27, 1
    %s29 = scalar_select %p26, %s27, %s28
    %p32 = pneg %p26
    %p33 = scmp.eq.s32.totalorder %s17, 2
    %p34 = por %p32, %p33
    %p35 = scmp.ne.s32.totalorder %s27, %s30
    %p36 = scmp.eq.s32.totalorder %s17, 0
    %p37 = por %p35, %p36
    %p38 = scmp.ne.s32.totalorder %s27, %s30
    %p39 = scmp.eq.s32.totalorder %s22, 2
    %p40 = por %p38, %p39
    %p41 = scmp.ne.s32.totalorder %s30, %s31
    %p42 = scmp.eq.s32.totalorder %s22, 0
    %p43 = por %p41, %p42
    %p44 = scmp.ne.s32.totalorder %s30, %s31
    %p45 = scmp.eq.s32.totalorder %s23, 2
    %p46 = por %p44, %p45
    %p48 = scmp.ne.s32.totalorder %s31, %s47
    %p49 = scmp.eq.s32.totalorder %s23, 0
    %p50 = por %p48, %p49
    %s52 = sadd.s32 %s51, 1
    %p55 = scmp.eq.s32.totalorder %s17, 2
    %p56 = scmp.ne.s32.totalorder %s51, %s53
    %p57 = scmp.eq.s32.totalorder %s17, 0
    %p58 = por %p56, %p57
    %p59 = scmp.ne.s32.totalorder %s51, %s53
    %p60 = scmp.eq.s32.totalorder %s22, 2
    %p61 = por %p59, %p60
    %p62 = scmp.ne.s32.totalorder %s53, %s54
    %p63 = scmp.eq.s32.totalorder %s22, 0
    %p64 = por %p62, %p63
    %p65 = scmp.ne.s32.totalorder %s53, %s54
    %p66 = scmp.eq.s32.totalorder %s23, 2
    %p67 = por %p65, %p66
    %p69 = scmp.ne.s32.totalorder %s54, %s68
    %p70 = scmp.eq.s32.totalorder %s23, 0
    %p71 = por %p69, %p70
    %s73 = sadd.s32 %s72, 1
    %p76 = scmp.eq.s32.totalorder %s17, 2
    %p77 = scmp.ne.s32.totalorder %s72, %s74
    %p78 = scmp.eq.s32.totalorder %s17, 0
    %p79 = por %p77, %p78
    %p80 = scmp.ne.s32.totalorder %s72, %s74
    %p81 = scmp.eq.s32.totalorder %s22, 2
    %p82 = por %p80, %p81
    %p83 = scmp.ne.s32.totalorder %s74, %s75
    %p84 = scmp.eq.s32.totalorder %s22, 0
    %p85 = por %p83, %p84
    %p86 = scmp.ne.s32.totalorder %s74, %s75
    %p87 = scmp.eq.s32.totalorder %s23, 2
    %p88 = por %p86, %p87
    %p90 = scmp.ne.s32.totalorder %s75, %s89
    %p91 = scmp.eq.s32.totalorder %s23, 0
    %p92 = por %p90, %p91
    %s94 = sadd.s32 %s93, 1
    %p97 = scmp.eq.s32.totalorder %s17, 2
    %p98 = scmp.ne.s32.totalorder %s93, %s95
    %p99 = scmp.eq.s32.totalorder %s17, 0
    %p100 = por %p98, %p99
    %p101 = scmp.ne.s32.totalorder %s93, %s95
    %p102 = scmp.eq.s32.totalorder %s22, 2
    %p103 = por %p101, %p102
    %p104 = scmp.ne.s32.totalorder %s95, %s96
    %p105 = scmp.eq.s32.totalorder %s22, 0
    %p106 = por %p104, %p105
    %p107 = scmp.ne.s32.totalorder %s95, %s96
    %p108 = scmp.eq.s32.totalorder %s23, 2
    %p109 = por %p107, %p108
    %p111 = scmp.ne.s32.totalorder %s96, %s110
    %p112 = scmp.eq.s32.totalorder %s23, 0
    %p113 = por %p111, %p112
    %s115 = sadd.s32 %s114, 1
    %p118 = scmp.eq.s32.totalorder %s17, 2
    %p119 = scmp.ne.s32.totalorder %s114, %s116
    %p120 = scmp.eq.s32.totalorder %s17, 0
    %p121 = por %p119, %p120
    %p122 = scmp.ne.s32.totalorder %s114, %s116
    %p123 = scmp.eq.s32.totalorder %s22, 2
    %p124 = por %p122, %p123
    %p125 = scmp.ne.s32.totalorder %s116, %s117
    %p126 = scmp.eq.s32.totalorder %s22, 0
    %p127 = por %p125, %p126
    %p128 = scmp.ne.s32.totalorder %s116, %s117
    %p129 = scmp.eq.s32.totalorder %s23, 2
    %p130 = por %p128, %p129
    %p132 = scmp.ne.s32.totalorder %s117, %s131
    %p133 = scmp.eq.s32.totalorder %s23, 0
    %p134 = por %p132, %p133
    %s136 = sadd.s32 %s135, 1
    %p139 = scmp.eq.s32.totalorder %s17, 2
    %p140 = scmp.ne.s32.totalorder %s135, %s137
    %p141 = scmp.eq.s32.totalorder %s17, 0
    %p142 = por %p140, %p141
    %p143 = scmp.ne.s32.totalorder %s135, %s137
    %p144 = scmp.eq.s32.totalorder %s22, 2
    %p145 = por %p143, %p144
    %p146 = scmp.ne.s32.totalorder %s137, %s138
    %p147 = scmp.eq.s32.totalorder %s22, 0
    %p148 = por %p146, %p147
    %p149 = scmp.ne.s32.totalorder %s137, %s138
    %p150 = scmp.eq.s32.totalorder %s23, 2
    %p151 = por %p149, %p150
    %p153 = scmp.ne.s32.totalorder %s138, %s152
    %p154 = scmp.eq.s32.totalorder %s23, 0
    %p155 = por %p153, %p154
    %s157 = sadd.s32 %s156, 1
    %p160 = scmp.eq.s32.totalorder %s17, 2
    %p161 = scmp.ne.s32.totalorder %s156, %s158
    %p162 = scmp.eq.s32.totalorder %s17, 0
    %p163 = por %p161, %p162
    %p164 = scmp.ne.s32.totalorder %s156, %s158
    %p165 = scmp.eq.s32.totalorder %s22, 2
    %p166 = por %p164, %p165
    %p167 = scmp.ne.s32.totalorder %s158, %s159
    %p168 = scmp.eq.s32.totalorder %s22, 0
    %p169 = por %p167, %p168
    %p170 = scmp.ne.s32.totalorder %s158, %s159
    %p171 = scmp.eq.s32.totalorder %s23, 2
    %p172 = por %p170, %p171
    %p174 = scmp.ne.s32.totalorder %s159, %s173
    %p175 = scmp.eq.s32.totalorder %s23, 0
    %p176 = por %p174, %p175
    %s178 = sadd.s32 %s177, 1
    %p181 = scmp.eq.s32.totalorder %s17, 2
    %p182 = scmp.ne.s32.totalorder %s177, %s179
    %p183 = scmp.eq.s32.totalorder %s17, 0
    %p184 = por %p182, %p183
    %p185 = scmp.ne.s32.totalorder %s177, %s179
    %p186 = scmp.eq.s32.totalorder %s22, 2
    %p187 = por %p185, %p186
    %p188 = scmp.ne.s32.totalorder %s179, %s180
    %p189 = scmp.eq.s32.totalorder %s22, 0
    %p190 = por %p188, %p189
    %p191 = scmp.ne.s32.totalorder %s179, %s180
    %p192 = scmp.eq.s32.totalorder %s23, 2
    %p193 = por %p191, %p192
    %p195 = scmp.ne.s32.totalorder %s180, %s194
    %p196 = scmp.eq.s32.totalorder %s23, 0
    %p197 = por %p195, %p196
    %s199 = sadd.s32 %s198, 1
    %p202 = scmp.eq.s32.totalorder %s17, 2
    %p203 = scmp.ne.s32.totalorder %s198, %s200
    %p204 = scmp.eq.s32.totalorder %s17, 0
    %p205 = por %p203, %p204
    %p206 = scmp.ne.s32.totalorder %s198, %s200
    %p207 = scmp.eq.s32.totalorder %s22, 2
    %p208 = por %p206, %p207
    %p209 = scmp.ne.s32.totalorder %s200, %s201
    %p210 = scmp.eq.s32.totalorder %s22, 0
    %p211 = por %p209, %p210
    %p212 = scmp.ne.s32.totalorder %s200, %s201
    %p213 = scmp.eq.s32.totalorder %s23, 2
    %p214 = por %p212, %p213
    %p216 = scmp.ne.s32.totalorder %s201, %s215
    %p217 = scmp.eq.s32.totalorder %s23, 0
    %p218 = por %p216, %p217
    %s220 = sadd.s32 %s219, 1
    %p223 = scmp.eq.s32.totalorder %s17, 2
    %p224 = scmp.ne.s32.totalorder %s219, %s221
    %p225 = scmp.eq.s32.totalorder %s17, 0
    %p226 = por %p224, %p225
    %p227 = scmp.ne.s32.totalorder %s219, %s221
    %p228 = scmp.eq.s32.totalorder %s22, 2
    %p229 = por %p227, %p228
    %p230 = scmp.ne.s32.totalorder %s221, %s222
    %p231 = scmp.eq.s32.totalorder %s22, 0
    %p232 = por %p230, %p231
    %p233 = scmp.ne.s32.totalorder %s221, %s222
    %p234 = scmp.eq.s32.totalorder %s23, 2
    %p235 = por %p233, %p234
    %p237 = scmp.ne.s32.totalorder %s222, %s236
    %p238 = scmp.eq.s32.totalorder %s23, 0
    %p239 = por %p237, %p238
    %s241 = sadd.s32 %s240, 1
    %p244 = scmp.eq.s32.totalorder %s17, 2
    %p245 = scmp.ne.s32.totalorder %s240, %s242
    %p246 = scmp.eq.s32.totalorder %s17, 0
    %p247 = por %p245, %p246
    %p248 = scmp.ne.s32.totalorder %s240, %s242
    %p249 = scmp.eq.s32.totalorder %s22, 2
    %p250 = por %p248, %p249
    %p251 = scmp.ne.s32.totalorder %s242, %s243
    %p252 = scmp.eq.s32.totalorder %s22, 0
    %p253 = por %p251, %p252
    %p254 = scmp.ne.s32.totalorder %s242, %s243
    %p255 = scmp.eq.s32.totalorder %s23, 2
    %p256 = por %p254, %p255
    %p258 = scmp.ne.s32.totalorder %s243, %s257
    %p259 = scmp.eq.s32.totalorder %s23, 0
    %p260 = por %p258, %p259
    %s261 = ssub.s32 %s17, %s24
    %p262 = scmp.eq.s32.totalorder %s261, 0
    %s264 = sadd.s32 %s263, 1
    %s265 = scalar_select %p262, %s263, %s264
    %p268 = pneg %p262
    %p269 = scmp.eq.s32.totalorder %s17, 2
    %p270 = por %p268, %p269
    %p271 = scmp.ne.s32.totalorder %s263, %s266
    %p272 = scmp.eq.s32.totalorder %s17, 0
    %p273 = por %p271, %p272
    %p274 = scmp.ne.s32.totalorder %s263, %s266
    %p275 = scmp.eq.s32.totalorder %s22, 2
    %p276 = por %p274, %p275
    %p277 = scmp.ne.s32.totalorder %s266, %s267
    %p278 = scmp.eq.s32.totalorder %s22, 0
    %p279 = por %p277, %p278
    %p280 = scmp.ne.s32.totalorder %s266, %s267
    %p281 = scmp.eq.s32.totalorder %s23, 2
    %p282 = por %p280, %p281
    %p284 = scmp.ne.s32.totalorder %s267, %s283
    %p285 = scmp.eq.s32.totalorder %s23, 0
    %p286 = por %p284, %p285
    %p287 = scmp.le.s32.totalorder 1, %s17
    %p288 = scmp.lt.s32.totalorder %s17, 4
    %p289 = pnand %p287, %p288
    %p290 = pneg %p289
    // Predicated region
    $region9: #{mlp_forward.1} parent=5 // pred_check
      _
    $region10: #{mlp_forward.1} parent=5 // pred_check_branch
      %292 = sbr.rel (%p289) target = $region12
    $region11: #{mlp_forward.1} parent=5 // pred_region
      %s293 = ssub.s32 %s17, 1
      // Predicated region
      $region13: #{mlp_forward.1} parent=11 // pred_check
        %p294 = pneg %p64
      $region14: #{mlp_forward.1} parent=11 // pred_check_branch
        %296 = sbr.rel (%p294) target = $region16
      $region15: #{mlp_forward.1} parent=11 // pred_region
        _
      $region16: #{mlp_forward.1} parent=11 // pred_fallthru
        _
      // Predicated region
      $region17: #{mlp_forward.1} parent=11 // pred_check
        %p297 = pneg %p85
      $region18: #{mlp_forward.1} parent=11 // pred_check_branch
        %299 = sbr.rel (%p297) target = $region20
      $region19: #{mlp_forward.1} parent=11 // pred_region
        _
      $region20: #{mlp_forward.1} parent=11 // pred_fallthru
        _
      // Predicated region
      $region21: #{mlp_forward.1} parent=11 // pred_check
        %p300 = pneg %p106
      $region22: #{mlp_forward.1} parent=11 // pred_check_branch
        %302 = sbr.rel (%p300) target = $region24
      $region23: #{mlp_forward.1} parent=11 // pred_region
        _
      $region24: #{mlp_forward.1} parent=11 // pred_fallthru
        _
      // Predicated region
      $region25: #{mlp_forward.1} parent=11 // pred_check
        %p303 = pneg %p127
      $region26: #{mlp_forward.1} parent=11 // pred_check_branch
        %305 = sbr.rel (%p303) target = $region28
      $region27: #{mlp_forward.1} parent=11 // pred_region
        _
      $region28: #{mlp_forward.1} parent=11 // pred_fallthru
        _
      // Predicated region
      $region29: #{mlp_forward.1} parent=11 // pred_check
        %p306 = pneg %p148
      $region30: #{mlp_forward.1} parent=11 // pred_check_branch
        %308 = sbr.rel (%p306) target = $region32
      $region31: #{mlp_forward.1} parent=11 // pred_region
        _
      $region32: #{mlp_forward.1} parent=11 // pred_fallthru
        _
      // Predicated region
      $region33: #{mlp_forward.1} parent=11 // pred_check
        %p309 = pneg %p169
      $region34: #{mlp_forward.1} parent=11 // pred_check_branch
        %311 = sbr.rel (%p309) target = $region36
      $region35: #{mlp_forward.1} parent=11 // pred_region
        _
      $region36: #{mlp_forward.1} parent=11 // pred_fallthru
        _
      // Predicated region
      $region37: #{mlp_forward.1} parent=11 // pred_check
        %p312 = pneg %p190
      $region38: #{mlp_forward.1} parent=11 // pred_check_branch
        %314 = sbr.rel (%p312) target = $region40
      $region39: #{mlp_forward.1} parent=11 // pred_region
        _
      $region40: #{mlp_forward.1} parent=11 // pred_fallthru
        _
      // Predicated region
      $region41: #{mlp_forward.1} parent=11 // pred_check
        %p315 = pneg %p211
      $region42: #{mlp_forward.1} parent=11 // pred_check_branch
        %317 = sbr.rel (%p315) target = $region44
      $region43: #{mlp_forward.1} parent=11 // pred_region
        _
      $region44: #{mlp_forward.1} parent=11 // pred_fallthru
        _
      // Predicated region
      $region45: #{mlp_forward.1} parent=11 // pred_check
        %p318 = pneg %p232
      $region46: #{mlp_forward.1} parent=11 // pred_check_branch
        %320 = sbr.rel (%p318) target = $region48
      $region47: #{mlp_forward.1} parent=11 // pred_region
        _
      $region48: #{mlp_forward.1} parent=11 // pred_fallthru
        _
      // Predicated region
      $region49: #{mlp_forward.1} parent=11 // pred_check
        %p321 = pneg %p253
      $region50: #{mlp_forward.1} parent=11 // pred_check_branch
        %323 = sbr.rel (%p321) target = $region52
      $region51: #{mlp_forward.1} parent=11 // pred_region
        _
      $region52: #{mlp_forward.1} parent=11 // pred_fallthru
        _
    $region12: #{mlp_forward.1} parent=5 // pred_fallthru
      _
    %p324 = scmp.lt.s32.totalorder %s17, 3
    // Predicated region
    $region53: #{mlp_forward.1} parent=5 // pred_check
      %p325 = pneg %p324
    $region54: #{mlp_forward.1} parent=5 // pred_check_branch
      %327 = sbr.rel (%p325) target = $region56
    $region55: #{mlp_forward.1} parent=5 // pred_region
      // Predicated region
      $region57: #{mlp_forward.1} parent=55 // pred_check
        %p328 = pneg %p37
      $region58: #{mlp_forward.1} parent=55 // pred_check_branch
        %330 = sbr.rel (%p328) target = $region60
      $region59: #{mlp_forward.1} parent=55 // pred_region
        %p331 = scmp.lt.s32.totalorder %s17, 2
        %s332 = scalar_select %p331, %s17, 2
        %s333 = smul.addr %s332, 8
        %s334 = scalar_lea.vmem %s0, %s333
      $region60: #{mlp_forward.1} parent=55 // pred_fallthru
        _
    $region56: #{mlp_forward.1} parent=5 // pred_fallthru
      _
    %p335 = scmp.le.s32.totalorder 1, %s17
    %p336 = scmp.lt.s32.totalorder %s17, 4
    %p337 = pnand %p335, %p336
    %p338 = pneg %p337
    // Predicated region
    $region61: #{mlp_forward.1} parent=5 // pred_check
      _
    $region62: #{mlp_forward.1} parent=5 // pred_check_branch
      %340 = sbr.rel (%p337) target = $region64
    $region63: #{mlp_forward.1} parent=5 // pred_region
      %s341 = ssub.s32 %s17, 1
      %p342 = scmp.lt.s32.totalorder %s22, 2
      %s343 = scalar_select %p342, %s22, 2
      %s344 = smul.addr %s343, 8
      %s345 = scalar_lea.vmem %s0, %s344
      %p346 = pneg %p43
      %p347 = pneg %p40
      %p348 = pneg %p64
      %p349 = pneg %p61
      %p350 = pneg %p85
      %p351 = pneg %p82
      %p352 = pneg %p106
      %p353 = pneg %p103
      %p354 = pneg %p127
      %p355 = pneg %p124
      %p356 = pneg %p148
      %p357 = pneg %p145
      %p358 = pneg %p169
      %p359 = pneg %p166
      %p360 = pneg %p190
      %p361 = pneg %p187
      %p362 = pneg %p211
      %p363 = pneg %p208
      %p364 = pneg %p232
      %p365 = pneg %p229
      %p366 = pneg %p253
      %p367 = pneg %p250
      %p368 = pneg %p279
      %p369 = pneg %p276
      %p370 = scmp.lt.s32.totalorder %s22, 2
      %s371 = scalar_select %p370, %s22, 2
      %s372 = smul.addr %s371, 8
      %s373 = scalar_lea.vmem %s11, %s372
      %p374 = scmp.lt.s32.totalorder %s22, 2
      %s375 = scalar_select %p374, %s22, 2
      %s376 = smul.addr %s375, 8
      %s377 = scalar_lea.vmem %s0, %s376
      %p378 = scmp.lt.s32.totalorder %s22, 2
      %s379 = scalar_select %p378, %s22, 2
      %s380 = smul.addr %s379, 8
      %s381 = scalar_lea.vmem %s11, %s380
      %v383 = vld [vmem:[%s377] sm:$0xff]
      %v384 = vlaneseq
      %v385 = vand.u32 %v384, 127
      %vm386 = vcmp.lt.s32.totalorder %v385, 16
      %388 = vset.pattern.permute.xlu0 0
      %389 = vperm.xlu0 %388, %v383
      %v390 = vpop.permute.xlu0 %389
      %392 = vset.pattern.permute.xlu0 1
      %393 = vperm.xlu0 %392, %v383
      %v394 = vpop.permute.xlu0 %393
      %v396 = vsel %vm386, %v390, %v394
      %v397 = vld [vmem:[%s1] sm:$0x1]
      %v399 = vperm.slane %v397, 0
      %v401 = vmul.f32 %v396, %v399
      %v402 = vand.u32 2147483647, %v401
      %vm403 = vcmp.le.f32.partialorder %v402, 0.7853982
      %vm404 = vcmp.lt.s32.totalorder %v401, 0
      %v405 = vand.u32 %v401, 2139095040
      %v406 = vshrl.u32 %v405, 23
      %v407 = vsub.s32 %v406, 127
      %v408 = vand.u32 2147483647, %v401
      %v409 = vand.u32 %v408, 8388607
      %v410 = vor.u32 %v409, 8388608
      %v411 = vsub.s32 0, %v410
      %v412 = vadd.s32 %v407, 1
      %vm413 = vcmp.gt.s32.totalorder %v412, 0
      %v414 = vsel %vm413, %v412, 0
      %v415 = vshrl.u32 %v414, 5
      %v416 = vand.u32 %v414, 31
      %v417 = vsub.s32 32, %v416
      %v418 = vshrl.u32 683565275, %v417
      %v419 = vshll.u32 683565275, %v416
      %v420 = vshrl.u32 2475754826, %v417
      %v421 = vor.u32 %v419, %v420
      %v422 = vshll.u32 2475754826, %v416
      %v423 = vshrl.u32 2131351028, %v417
      %v424 = vor.u32 %v422, %v423
      %v425 = vshll.u32 2131351028, %v416
      %v426 = vshrl.u32 2102212464, %v417
      %v427 = vor.u32 %v425, %v426
      %v428 = vshll.u32 2102212464, %v416
      %v429 = vshrl.u32 920167782, %v417
      %v430 = vor.u32 %v428, %v429
      %v431 = vshll.u32 920167782, %v416
      %v432 = vshrl.u32 1326507024, %v417
      %v433 = vor.u32 %v431, %v432
      %vm434 = vcmp.lt.s32.totalorder %v415, 1
      %vm435 = vcmp.lt.s32.totalorder %v415, 2
      %vm436 = vcmp.lt.s32.totalorder %v415, 3
      %vm437 = vcmp.lt.s32.totalorder %v415, 4
      %v438 = vsel %vm434, %v418, %v421
      %v439 = vsel %vm437, %v427, 2102212464
      %v440 = vsel %vm436, %v424, %v439
      %v441 = vsel %vm435, %v438, %v440
      %v442 = vsel %vm434, %v421, %v424
      %v443 = vsel %vm437, %v430, 920167782
      %v444 = vsel %vm436, %v427, %v443
      %v445 = vsel %vm435, %v442, %v444
      %v446 = vsel %vm434, %v424, %v427
      %v447 = vsel %vm437, %v433, 1326507024
      %v448 = vsel %vm436, %v430, %v447
      %v449 = vsel %vm435, %v446, %v448
      %v450 = vshll.u32 %v410, 8
      %v451 = vand.u32 %v450, 65535
      %v452 = vshrl.u32 %v450, 16
      %v453 = vand.u32 %v449, 65535
      %v454 = vshrl.u32 %v449, 16
      %v455 = vmul.u32 %v451, %v453
      %v456 = vmul.u32 %v451, %v454
      %v457 = vmul.u32 %v452, %v453
      %v458 = vmul.u32 %v452, %v454
      %v459 = vshll.u32 %v456, 16
      %v460 = vshrl.u32 %v456, 16
      %v461 = vshll.u32 %v457, 16
      %v462 = vshrl.u32 %v457, 16
      %vm463 = vc.u32 %v455, %v459
      %v464 = vsel %vm463, 1, 0
      %v465 = vadd.s32 %v455, %v459
      %v466 = vadd.s32 %v458, %v464
      %vm467 = vc.u32 %v465, %v461
      %v468 = vsel %vm467, 1, 0
      %v469 = vadd.s32 %v465, %v461
      %v470 = vadd.s32 %v466, %v468
      %v471 = vadd.s32 %v470, %v460
      %v472 = vadd.s32 %v471, %v462
      %v473 = vand.u32 %v450, 65535
      %v474 = vshrl.u32 %v450, 16
      %v475 = vand.u32 %v445, 65535
      %v476 = vshrl.u32 %v445, 16
      %v477 = vmul.u32 %v473, %v475
      %v478 = vmul.u32 %v473, %v476
      %v479 = vmul.u32 %v474, %v475
      %v480 = vmul.u32 %v474, %v476
      %v481 = vshll.u32 %v478, 16
      %v482 = vshrl.u32 %v478, 16
      %v483 = vshll.u32 %v479, 16
      %v484 = vshrl.u32 %v479, 16
      %vm485 = vc.u32 %v477, %v481
      %v486 = vsel %vm485, 1, 0
      %v487 = vadd.s32 %v477, %v481
      %v488 = vadd.s32 %v480, %v486
      %vm489 = vc.u32 %v487, %v483
      %v490 = vsel %vm489, 1, 0
      %v491 = vadd.s32 %v487, %v483
      %v492 = vadd.s32 %v488, %v490
      %v493 = vadd.s32 %v492, %v482
      %v494 = vadd.s32 %v493, %v484
      %v495 = vmul.u32 %v450, %v441
      %v496 = vadd.s32 %v472, %v491
      %vm497 = vc.u32 %v472, %v491
      %v498 = vadd.s32 %v494, 1
      %v499 = vsel %vm497, %v498, %v494
      %v500 = vadd.s32 %v495, %v499
      %v501 = vadd.s32 %v500, 536870912
      %v502 = vshrl.u32 %v501, 30
      %v503 = vshll.u32 %v502, 30
      %v504 = vsub.s32 %v500, %v503
      %vm505 = vcmp.lt.s32.totalorder %v504, 0
      %v506 = vsub.s32 0, %v504
      %v507 = vsel %vm505, %v506, %v504
      %v508 = vclz %v507
      %v509 = vsub.s32 %v508, 2
      %vm510 = vcmp.gt.s32.totalorder 0, %v509
      %v511 = vsel %vm510, 0, %v509
      %v512 = vsub.s32 32, %v511
      %v513 = vshll.u32 %v504, %v511
      %v514 = vshrl.u32 %v496, %v512
      %v515 = vor.u32 %v513, %v514
      %v516 = vsub.s32 4294967266, %v511
      %v517 = vadd.s32 %v516, 127
      %v518 = vshll.u32 %v517, 23
      %v519 = vor.u32 4788187, %v518
      %v520 = vand.u32 2147483647, %v519
      %v522 = vcvt.s32.f32 %v515
      %v523 = vmul.f32 %v522, %v520
      %v524 = vxor.u32 %v523, 2147483648
      %v525 = vsel %vm404, %v524, %v523
      %v526 = vsub.s32 4, %v502
      %v527 = vsel %vm404, %v526, %v502
      %v528 = vsel %vm403, %v401, %v525
      %v529 = vsel %vm403, 0, %v527
      %v530 = vmul.f32 %v528, %v528
      %v531 = vmul.f32 %v530, -0.001358992
      %v532 = vadd.f32 %v531, 0.041655596
      %v533 = vmul.f32 %v530, %v532
      %v534 = vadd.f32 %v533, -0.4999988
      %v535 = vmul.f32 %v530, %v534
      %v536 = vadd.f32 1.0, %v535
      %v537 = vmul.f32 %v528, %v528
      %v538 = vmul.f32 %v537, -0.00019511016
      %v539 = vadd.f32 %v538, 0.008332121
      %v540 = vmul.f32 %v537, %v539
      %v541 = vadd.f32 %v540, -0.16666654
      %v542 = vmul.f32 %v537, %v541
      %v543 = vadd.f32 %v542, 1.0
      %v544 = vmul.f32 %v543, %v528
      %vm545 = vweird.f32 %v401
      %v546 = vadd.s32 %v529, 3
      %v547 = vand.u32 %v546, 3
      %vm548 = vcmp.lt.s32.totalorder %v547, 2
      %vm549 = vcmp.eq.s32.totalorder %v547, 0
      %v550 = vxor.u32 %v544, 2147483648
      %v551 = vsel %vm549, %v536, %v550
      %vm552 = vcmp.eq.s32.totalorder %v547, 2
      %v553 = vxor.u32 %v536, 2147483648
      %v554 = vsel %vm552, %v553, %v544
      %v555 = vsel %vm548, %v551, %v554
      %v556 = vsel %vm545, nan, %v555
      %v557 = vpack.c.bf16 %v556, %v556
      %v558 = vld [vmem:[%s2] sm:$0xf]
      %v559 = vld [vmem:[%s2 + $0x4] sm:$0xf]
      %v560 = vld [vmem:[%s2 + $0x8] sm:$0xf]
      %v561 = vld [vmem:[%s2 + $0xc] sm:$0xf]
      %v562 = vand.u32 2147483647, %v401
      %vm563 = vcmp.le.f32.partialorder %v562, 0.7853982
      %vm564 = vcmp.lt.s32.totalorder %v401, 0
      %v565 = vand.u32 %v401, 2139095040
      %v566 = vshrl.u32 %v565, 23
      %v567 = vsub.s32 %v566, 127
      %v568 = vand.u32 2147483647, %v401
      %v569 = vand.u32 %v568, 8388607
      %v570 = vor.u32 %v569, 8388608
      %v571 = vsub.s32 0, %v570
      %v572 = vadd.s32 %v567, 1
      %vm573 = vcmp.gt.s32.totalorder %v572, 0
      %v574 = vsel %vm573, %v572, 0
      %v575 = vshrl.u32 %v574, 5
      %v576 = vand.u32 %v574, 31
      %v577 = vsub.s32 32, %v576
      %v578 = vshrl.u32 683565275, %v577
      %v579 = vshll.u32 683565275, %v576
      %v580 = vshrl.u32 2475754826, %v577
      %v581 = vor.u32 %v579, %v580
      %v582 = vshll.u32 2475754826, %v576
      %v583 = vshrl.u32 2131351028, %v577
      %v584 = vor.u32 %v582, %v583
      %v585 = vshll.u32 2131351028, %v576
      %v586 = vshrl.u32 2102212464, %v577
      %v587 = vor.u32 %v585, %v586
      %v588 = vshll.u32 2102212464, %v576
      %v589 = vshrl.u32 920167782, %v577
      %v590 = vor.u32 %v588, %v589
      %v591 = vshll.u32 920167782, %v576
      %v592 = vshrl.u32 1326507024, %v577
      %v593 = vor.u32 %v591, %v592
      %vm594 = vcmp.lt.s32.totalorder %v575, 1
      %vm595 = vcmp.lt.s32.totalorder %v575, 2
      %vm596 = vcmp.lt.s32.totalorder %v575, 3
      %vm597 = vcmp.lt.s32.totalorder %v575, 4
      %v598 = vsel %vm594, %v578, %v581
      %v599 = vsel %vm597, %v587, 2102212464
      %v600 = vsel %vm596, %v584, %v599
      %v601 = vsel %vm595, %v598, %v600
      %v602 = vsel %vm594, %v581, %v584
      %v603 = vsel %vm597, %v590, 920167782
      %v604 = vsel %vm596, %v587, %v603
      %v605 = vsel %vm595, %v602, %v604
      %v606 = vsel %vm594, %v584, %v587
      %v607 = vsel %vm597, %v593, 1326507024
      %v608 = vsel %vm596, %v590, %v607
      %v609 = vsel %vm595, %v606, %v608
      %v610 = vshll.u32 %v570, 8
      %v611 = vand.u32 %v610, 65535
      %v612 = vshrl.u32 %v610, 16
      %v613 = vand.u32 %v609, 65535
      %v614 = vshrl.u32 %v609, 16
      %v615 = vmul.u32 %v611, %v613
      %v616 = vmul.u32 %v611, %v614
      %v617 = vmul.u32 %v612, %v613
      %v618 = vmul.u32 %v612, %v614
      %v619 = vshll.u32 %v616, 16
      %v620 = vshrl.u32 %v616, 16
      %v621 = vshll.u32 %v617, 16
      %v622 = vshrl.u32 %v617, 16
      %vm623 = vc.u32 %v615, %v619
      %v624 = vsel %vm623, 1, 0
      %v625 = vadd.s32 %v615, %v619
      %v626 = vadd.s32 %v618, %v624
      %vm627 = vc.u32 %v625, %v621
      %v628 = vsel %vm627, 1, 0
      %v629 = vadd.s32 %v625, %v621
      %v630 = vadd.s32 %v626, %v628
      %v631 = vadd.s32 %v630, %v620
      %v632 = vadd.s32 %v631, %v622
      %v633 = vand.u32 %v610, 65535
      %v634 = vshrl.u32 %v610, 16
      %v635 = vand.u32 %v605, 65535
      %v636 = vshrl.u32 %v605, 16
      %v637 = vmul.u32 %v633, %v635
      %v638 = vmul.u32 %v633, %v636
      %v639 = vmul.u32 %v634, %v635
      %v640 = vmul.u32 %v634, %v636
      %v641 = vshll.u32 %v638, 16
      %v642 = vshrl.u32 %v638, 16
      %v643 = vshll.u32 %v639, 16
      %v644 = vshrl.u32 %v639, 16
      %vm645 = vc.u32 %v637, %v641
      %v646 = vsel %vm645, 1, 0
      %v647 = vadd.s32 %v637, %v641
      %v648 = vadd.s32 %v640, %v646
      %vm649 = vc.u32 %v647, %v643
      %v650 = vsel %vm649, 1, 0
      %v651 = vadd.s32 %v647, %v643
      %v652 = vadd.s32 %v648, %v650
      %v653 = vadd.s32 %v652, %v642
      %v654 = vadd.s32 %v653, %v644
      %v655 = vmul.u32 %v610, %v601
      %v656 = vadd.s32 %v632, %v651
      %vm657 = vc.u32 %v632, %v651
      %v658 = vadd.s32 %v654, 1
      %v659 = vsel %vm657, %v658, %v654
      %v660 = vadd.s32 %v655, %v659
      %v661 = vadd.s32 %v660, 536870912
      %v662 = vshrl.u32 %v661, 30
      %v663 = vshll.u32 %v662, 30
      %v664 = vsub.s32 %v660, %v663
      %vm665 = vcmp.lt.s32.totalorder %v664, 0
      %v666 = vsub.s32 0, %v664
      %v667 = vsel %vm665, %v666, %v664
      %v668 = vclz %v667
      %v669 = vsub.s32 %v668, 2
      %vm670 = vcmp.gt.s32.totalorder 0, %v669
      %v671 = vsel %vm670, 0, %v669
      %v672 = vsub.s32 32, %v671
      %v673 = vshll.u32 %v664, %v671
      %v674 = vshrl.u32 %v656, %v672
      %v675 = vor.u32 %v673, %v674
      %v676 = vsub.s32 4294967266, %v671
      %v677 = vadd.s32 %v676, 127
      %v678 = vshll.u32 %v677, 23
      %v679 = vor.u32 4788187, %v678
      %v680 = vand.u32 2147483647, %v679
      %v682 = vcvt.s32.f32 %v675
      %v683 = vmul.f32 %v682, %v680
      %v684 = vxor.u32 %v683, 2147483648
      %v685 = vsel %vm564, %v684, %v683
      %v686 = vsub.s32 4, %v662
      %v687 = vsel %vm564, %v686, %v662
      %v688 = vsel %vm563, %v401, %v685
      %v689 = vsel %vm563, 0, %v687
      %v690 = vmul.f32 %v688, %v688
      %v691 = vmul.f32 %v690, -0.001358992
      %v692 = vadd.f32 %v691, 0.041655596
      %v693 = vmul.f32 %v690, %v692
      %v694 = vadd.f32 %v693, -0.4999988
      %v695 = vmul.f32 %v690, %v694
      %v696 = vadd.f32 1.0, %v695
      %v697 = vmul.f32 %v688, %v688
      %v698 = vmul.f32 %v697, -0.00019511016
      %v699 = vadd.f32 %v698, 0.008332121
      %v700 = vmul.f32 %v697, %v699
      %v701 = vadd.f32 %v700, -0.16666654
      %v702 = vmul.f32 %v697, %v701
      %v703 = vadd.f32 %v702, 1.0
      %v704 = vmul.f32 %v703, %v688
      %vm705 = vweird.f32 %v401
      %v706 = vand.u32 %v689, 3
      %vm707 = vcmp.lt.s32.totalorder %v706, 2
      %vm708 = vcmp.eq.s32.totalorder %v706, 0
      %v709 = vxor.u32 %v704, 2147483648
      %v710 = vsel %vm708, %v696, %v709
      %vm711 = vcmp.eq.s32.totalorder %v706, 2
      %v712 = vxor.u32 %v696, 2147483648
      %v713 = vsel %vm711, %v712, %v704
      %v714 = vsel %vm707, %v710, %v713
      %v715 = vsel %vm705, nan, %v714
      %v716 = vpack.c.bf16 %v715, %v715
      %v717 = vld [vmem:[%s3] sm:$0xf]
      %v718 = vld [vmem:[%s3 + $0x4] sm:$0xf]
      %v719 = vld [vmem:[%s3 + $0x8] sm:$0xf]
      %v720 = vld [vmem:[%s3 + $0xc] sm:$0xf]
      %v725 = vunpack.c.l.b16 %v717
      %v726 = vunpack.c.l.b16 %v718
      %v727 = vunpack.c.l.b16 %v719
      %v728 = vunpack.c.l.b16 %v720
      %v729 = vpack.c.b16 %v726, %v725
      %v730 = vpack.c.b16 %v728, %v727
      %vm733 = vcmask 261120
      %v735 = vsel %vm733, %v716, 0
      %737 = vmatpush.bf16.msra.mxu0 0
      %738 = vmatpush.bf16.msra.mxu0 0
      %739 = vmatpush.bf16.msra.mxu0 0
      %740 = vmatpush.bf16.msra.mxu0 0
      %741 = vmatpush.bf16.msra.mxu0 0
      %742 = vmatpush.bf16.msra.mxu0 0
      %743 = vmatpush.bf16.msra.mxu0 %v730
      %744 = vmatpush.bf16.msra.mxu0 %v729
      %745 = vmatmul.bf16.gmra.mxu0 %v735
      %v746 = vpop.f32.mrf.mxu0
      %v747 = vadd.f32 0.0, %v746
      %v748 = vpop.f32.mrf.mxu0
      %749 = vdwg.mxu0
      %v754 = vunpack.c.l.b16 %v558
      %v755 = vunpack.c.l.b16 %v559
      %v756 = vunpack.c.l.b16 %v560
      %v757 = vunpack.c.l.b16 %v561
      %v758 = vpack.c.b16 %v755, %v754
      %v759 = vpack.c.b16 %v757, %v756
      %v763 = vsel %vm733, %v557, 0
      %765 = vmatpush.bf16.msra.mxu0 0
      %766 = vmatpush.bf16.msra.mxu0 0
      %767 = vmatpush.bf16.msra.mxu0 0
      %768 = vmatpush.bf16.msra.mxu0 0
      %769 = vmatpush.bf16.msra.mxu0 0
      %770 = vmatpush.bf16.msra.mxu0 0
      %771 = vmatpush.bf16.msra.mxu0 %v759
      %772 = vmatpush.bf16.msra.mxu0 %v758
      %773 = vmatmul.bf16.gmra.mxu0 %v763
      %v774 = vpop.f32.mrf.mxu0
      %v775 = vadd.f32 %v747, %v774
      %v776 = vpop.f32.mrf.mxu0
      %777 = vdwg.mxu0
      %v778 = vld [vmem:[%s4] sm:$0x1]
      %v780 = vperm.slane %v778, 0
      %v782 = vadd.f32 %v775, %v780
      %v783 = vmax.f32 %v782, 0.0
      %v784 = vpack.c.bf16 %v783, %v783
      %v785 = vld [vmem:[%s5] sm:$0xf]
      %v786 = vld [vmem:[%s5 + $0x4] sm:$0xf]
      %v787 = vld [vmem:[%s5 + $0x8] sm:$0xf]
      %v788 = vld [vmem:[%s5 + $0xc] sm:$0xf]
      %v789 = vld [vmem:[%s6] sm:$0x1]
      %v791 = vperm.slane %v789, 0
      %v797 = vunpack.c.l.b16 %v785
      %v798 = vunpack.c.l.b16 %v786
      %v799 = vunpack.c.l.b16 %v787
      %v800 = vunpack.c.l.b16 %v788
      %v801 = vpack.c.b16 %v798, %v797
      %v802 = vpack.c.b16 %v800, %v799
      %v806 = vsel %vm733, %v784, 0
      %808 = vmatpush.bf16.msra.mxu0 0
      %809 = vmatpush.bf16.msra.mxu0 0
      %810 = vmatpush.bf16.msra.mxu0 0
      %811 = vmatpush.bf16.msra.mxu0 0
      %812 = vmatpush.bf16.msra.mxu0 0
      %813 = vmatpush.bf16.msra.mxu0 0
      %814 = vmatpush.bf16.msra.mxu0 %v802
      %815 = vmatpush.bf16.msra.mxu0 %v801
      %816 = vmatmul.bf16.gmra.mxu0 %v806
      %v817 = vpop.f32.mrf.mxu0
      %v818 = vadd.f32 %v791, %v817
      %v819 = vpop.f32.mrf.mxu0
      %820 = vdwg.mxu0
      %v821 = vmax.f32 %v818, 0.0
      %v822 = vpack.c.bf16 %v821, %v821
      %v823 = vld [vmem:[%s7] sm:$0xf]
      %v824 = vld [vmem:[%s7 + $0x4] sm:$0xf]
      %v825 = vld [vmem:[%s7 + $0x8] sm:$0xf]
      %v826 = vld [vmem:[%s7 + $0xc] sm:$0xf]
      %v827 = vld [vmem:[%s8] sm:$0x1]
      %v829 = vperm.slane %v827, 0
      %v835 = vunpack.c.l.b16 %v823
      %v836 = vunpack.c.l.b16 %v824
      %v837 = vunpack.c.l.b16 %v825
      %v838 = vunpack.c.l.b16 %v826
      %v839 = vpack.c.b16 %v836, %v835
      %v840 = vpack.c.b16 %v838, %v837
      %v844 = vsel %vm733, %v822, 0
      %846 = vmatpush.bf16.msra.mxu0 0
      %847 = vmatpush.bf16.msra.mxu0 0
      %848 = vmatpush.bf16.msra.mxu0 0
      %849 = vmatpush.bf16.msra.mxu0 0
      %850 = vmatpush.bf16.msra.mxu0 0
      %851 = vmatpush.bf16.msra.mxu0 0
      %852 = vmatpush.bf16.msra.mxu0 %v840
      %853 = vmatpush.bf16.msra.mxu0 %v839
      %854 = vmatmul.bf16.gmra.mxu0 %v844
      %v855 = vpop.f32.mrf.mxu0
      %v856 = vadd.f32 %v829, %v855
      %v857 = vpop.f32.mrf.mxu0
      %858 = vdwg.mxu0
      %v859 = vmax.f32 %v856, 0.0
      %v860 = vpack.c.bf16 %v859, %v859
      %v861 = vld [vmem:[%s9] sm:$0xf]
      %v862 = vld [vmem:[%s9 + $0x4] sm:$0xf]
      %v863 = vld [vmem:[%s9 + $0x8] sm:$0xf]
      %v864 = vld [vmem:[%s9 + $0xc] sm:$0xf]
      %v865 = vld [vmem:[%s10] sm:$0x1]
      %v867 = vperm.slane %v865, 0
      %v873 = vunpack.c.l.b16 %v861
      %v874 = vunpack.c.l.b16 %v862
      %v875 = vunpack.c.l.b16 %v863
      %v876 = vunpack.c.l.b16 %v864
      %v877 = vpack.c.b16 %v874, %v873
      %v878 = vpack.c.b16 %v876, %v875
      %v882 = vsel %vm733, %v860, 0
      %884 = vmatpush.bf16.msra.mxu0 0
      %885 = vmatpush.bf16.msra.mxu0 0
      %886 = vmatpush.bf16.msra.mxu0 0
      %887 = vmatpush.bf16.msra.mxu0 0
      %888 = vmatpush.bf16.msra.mxu0 0
      %889 = vmatpush.bf16.msra.mxu0 0
      %890 = vmatpush.bf16.msra.mxu0 %v878
      %891 = vmatpush.bf16.msra.mxu0 %v877
      %892 = vmatmul.bf16.gmra.mxu0 %v882
      %v893 = vpop.f32.mrf.mxu0
      %v894 = vadd.f32 %v867, %v893
      %v895 = vpop.f32.mrf.mxu0
      %896 = vdwg.mxu0
      %897 = vst [vmem:[%s381] sm:$0xff] %v894
      %p898 = scmp.lt.s32.totalorder %s22, 2
      %s899 = scalar_select %p898, %s22, 2
      %s900 = smul.addr %s899, 8
      %s901 = scalar_lea.vmem %s11, %s900
      // Predicated region
      $region65: #{mlp_forward.1} parent=63 // pred_check
        %p902 = pneg %p276
      $region66: #{mlp_forward.1} parent=63 // pred_check_branch
        %904 = sbr.rel (%p902) target = $region68
      $region67: #{mlp_forward.1} parent=63 // pred_region
        _
      $region68: #{mlp_forward.1} parent=63 // pred_fallthru
        _
    $region64: #{mlp_forward.1} parent=5 // pred_fallthru
      _
    %p905 = scmp.le.s32.totalorder 2, %s17
    // Predicated region
    $region69: #{mlp_forward.1} parent=5 // pred_check
      %p906 = pneg %p905
    $region70: #{mlp_forward.1} parent=5 // pred_check_branch
      %908 = sbr.rel (%p906) target = $region72
    $region71: #{mlp_forward.1} parent=5 // pred_region
      %s909 = ssub.s32 %s17, 2
      // Predicated region
      $region73: #{mlp_forward.1} parent=71 // pred_check
        %p910 = pneg %p282
      $region74: #{mlp_forward.1} parent=71 // pred_check_branch
        %912 = sbr.rel (%p910) target = $region76
      $region75: #{mlp_forward.1} parent=71 // pred_region
        %p913 = scmp.lt.s32.totalorder %s23, 2
        %s914 = scalar_select %p913, %s23, 2
        %s915 = smul.addr %s914, 8
        %s916 = scalar_lea.vmem %s11, %s915
      $region76: #{mlp_forward.1} parent=71 // pred_fallthru
        _
    $region72: #{mlp_forward.1} parent=5 // pred_fallthru
      _
  $region6: #{mlp_forward.1} parent=0 // loop_footer
    %s21 = sadd.s32 1, %s17
  $region7: #{mlp_forward.1} parent=0 // loop_footer_branch
    %16 = sbr.rel target = $region3
  $region8: #{mlp_forward.1} parent=0 // loop_exit
    _

</llo_original>
